<compile_context>
chip_gen: v7x
topology: tpu7x:2x2x1
jax: 0.10.0
libtpu: 0.0.40
codegen_flags: <defaults>
</compile_context>

<pallas_src>
import functools

import jax
import jax.numpy as jnp
from jax import lax
from jax.experimental import pallas as pl
from jax.experimental.pallas import tpu as pltpu


def mha_kernel(x_ref, wqkv_ref, wo_ref, bo_ref, o_ref, stage_ref, *, num_heads, head_size):
    Bb, T, C = x_ref.shape
    rows = Bb * T
    hs = head_size
    C_out = o_ref.shape[-1]

    x2d = x_ref[...].reshape(rows, C)                                    # bf16

    # Fused QKV projection for all heads: one wide bf16 MXU matmul, f32 accumulation.
    # Column layout: [ Q(head0..H-1) | K(head0..H-1) | V(head0..H-1) ], each C wide.
    # The softmax scale is pre-folded into the Q columns by the wrapper.
    qkv = jnp.dot(x2d, wqkv_ref[...], preferred_element_type=jnp.float32)
    qkv = qkv.astype(jnp.bfloat16)                                       # (rows, 3C)

    # Heads: static unroll; each head is a 3-D dot_general batched over Bb.  Per-head
    # results are staged straight into a VMEM (rows, C) buffer so the output
    # projection is a single K=C matmul (no live f32 accumulator across the loop).
    # TODO(synk): a fully head-batched 4-D dot_general (batch dims (Bb, H)) would also
    # remove the per-head lane slices, but multi-batch-dim dot_general / non-minor
    # transposes are not reliably lowered by Mosaic, so heads stay unrolled.
    for h in range(num_heads):
        q = qkv[:, h * hs:(h + 1) * hs].reshape(Bb, T, hs)               # pre-scaled
        k = qkv[:, C + h * hs:C + (h + 1) * hs].reshape(Bb, T, hs)
        v = qkv[:, 2 * C + h * hs:2 * C + (h + 1) * hs].reshape(Bb, T, hs)

        # Scores: contract the hs axis directly (no explicit k transpose), f32 result.
        s = lax.dot_general(q, k, (((2,), (2,)), ((0,), (0,))),
                            preferred_element_type=jnp.float32)          # (Bb, T, T)
        s = s - jnp.max(s, axis=-1, keepdims=True)
        p = jnp.exp(s)
        p = p * pl.reciprocal(jnp.sum(p, axis=-1, keepdims=True), approx=True)
        # attention dropout is identity in eval mode

        attn = lax.dot_general(p.astype(jnp.bfloat16), v,
                               (((2,), (1,)), ((0,), (0,))),
                               preferred_element_type=jnp.float32)       # (Bb, T, hs)
        stage_ref[:, h * hs:(h + 1) * hs] = attn.reshape(rows, hs).astype(jnp.bfloat16)

    # Single output projection over the full C contraction; bias folded in here.
    y = jnp.dot(stage_ref[...], wo_ref[...], preferred_element_type=jnp.float32)
    y = y + bo_ref[...]                                                  # (1, C_out) broadcast
    # final dropout is identity in eval mode
    o_ref[...] = y.reshape(Bb, T, C_out).astype(o_ref.dtype)


def _resident_weight_spec(block_shape):
    """BlockSpec for a grid-invariant weight: constant index_map, single-buffered
    (pipeline_mode=pl.Buffered(1)) when the installed JAX supports it."""
    index_map = lambda b: (0,) * len(block_shape)
    try:
        return pl.BlockSpec(block_shape, index_map, pipeline_mode=pl.Buffered(1))
    except (AttributeError, TypeError, ValueError):
        return pl.BlockSpec(block_shape, index_map)


@jax.jit
def multi_head_attention(x, wq, wk, wv, wo, bo):
    """x: (B, T, C); wq/wk/wv: (H, C, hs) (pre-transposed so x @ W works);
    wo: (C, C) already transposed; bo: (1, C)."""
    B, T, C = x.shape
    H, _, hs = wq.shape
    assert H * hs == C
    scale = C ** (-0.5)                      # matches the reference module: C = n_embd

    # Fuse per-head projection weights into one (C, 3C) matrix; fold the softmax scale
    # into the Q columns; cast to bf16 (matmuls run bf16 with f32 accumulation).
    wq_f = wq.transpose(1, 0, 2).reshape(C, H * hs) * scale
    wk_f = wk.transpose(1, 0, 2).reshape(C, H * hs)
    wv_f = wv.transpose(1, 0, 2).reshape(C, H * hs)
    wqkv = jnp.concatenate([wq_f, wk_f, wv_f], axis=1).astype(jnp.bfloat16)   # (C, 3C)

    # Lane-dense output stores: only pad the projection N dim when C is unaligned.
    if C % 128 == 0:
        C_pad = C
        wo_p = wo.astype(jnp.bfloat16)
        bo_p = bo.astype(jnp.float32)
    else:
        C_pad = ((C + 127) // 128) * 128
        wo_p = jnp.pad(wo, ((0, 0), (0, C_pad - C))).astype(jnp.bfloat16)
        bo_p = jnp.pad(bo, ((0, 0), (0, C_pad - C))).astype(jnp.float32)

    x_b = x.astype(jnp.bfloat16)

    # Rows per grid step: ~256 target (amortize per-step pipeline overhead, fill the
    # MXU M dim), but keep >= 2 grid steps when B >= 2 so both v7x TensorCores work.
    target_rows = 256
    bb = min(B, max(1, target_rows // max(T, 1)))
    if B >= 2:
        bb = min(bb, max(1, B // 2))
    while B % bb:
        bb -= 1
    grid = (B // bb,)
    rows = bb * T

    # Explicit VMEM budget: single-buffered weights + double-buffered x/out blocks
    # + in-kernel intermediates (qkv f32+bf16, scores, staging, projection output).
    weight_bytes = wqkv.size * 2 + wo_p.size * 2 + bo_p.size * 4
    block_bytes = 2 * rows * C * 2 + 2 * rows * C_pad * 4
    inter_bytes = (rows * 3 * C * (4 + 2) + bb * T * T * 4 * 2
                   + rows * C * 2 + rows * C_pad * 4)
    vmem_limit = int(min(64 * 2**20,
                         max(32 * 2**20, 2 * (weight_bytes + block_bytes + inter_bytes))))

    kernel = functools.partial(mha_kernel, num_heads=H, head_size=hs)

    flops = (2 * B * T * C * 3 * C              # fused QKV projection
             + 2 * 2 * B * H * T * T * hs       # q@k^T and p@v
             + 2 * B * T * C * C_pad)           # output projection
    bytes_accessed = (2 * B * T * C + 2 * C * 3 * C + 2 * C * C_pad
                      + 4 * C_pad + 4 * B * T * C_pad)
    ce = pl.CostEstimate(flops=flops, transcendentals=B * H * T * T,
                         bytes_accessed=bytes_accessed)

    grid_spec = pltpu.PrefetchScalarGridSpec(
        num_scalar_prefetch=0,
        grid=grid,
        in_specs=[
            pl.BlockSpec((bb, T, C), lambda b: (b, 0, 0)),     # x: bb batch elems / step
            _resident_weight_spec((C, 3 * C)),                 # fused Wqkv (grid-resident)
            _resident_weight_spec((C, C_pad)),                 # Wo (N padded to lanes)
            _resident_weight_spec((1, C_pad)),                 # bo
        ],
        out_specs=pl.BlockSpec((bb, T, C_pad), lambda b: (b, 0, 0)),
        scratch_shapes=[pltpu.VMEM((rows, C), jnp.bfloat16)],  # head-concat staging
    )

    out = pl.pallas_call(
        kernel,
        out_shape=jax.ShapeDtypeStruct((B, T, C_pad), x.dtype),
        grid_spec=grid_spec,
        compiler_params=pltpu.CompilerParams(
            dimension_semantics=("parallel",),
            vmem_limit_bytes=vmem_limit),
        cost_estimate=ce,
    )(x_b, wqkv, wo_p, bo_p)
    return out if C_pad == C else out[..., :C]


def multi_head_attention_ref(x, wq, wk, wv, wo, bo):
    """Pure-JAX reference mirroring the PyTorch forward (f32)."""
    B, T, C = x.shape
    H = wq.shape[0]
    scale = C ** (-0.5)
    outs = []
    for h in range(H):
        q = x @ wq[h]
        k = x @ wk[h]
        v = x @ wv[h]
        wei = jnp.einsum("btd,bsd->bts", q, k) * scale
        wei = jax.nn.softmax(wei, axis=-1)
        outs.append(jnp.einsum("bts,bsd->btd", wei, v))
    concat = jnp.concatenate(outs, axis=-1)
    return concat @ wo + bo


if __name__ == "__main__":
    # Small shapes consistent with the module: B=2, T=8 tokens, n_embd=32, 4 heads of size 8.
    B, T, n_embd = 2, 8, 32
    num_heads, head_size = 4, 8

    key = jax.random.PRNGKey(0)
    k_x, k_q, k_k, k_v, k_o, k_b = jax.random.split(key, 6)

    x = jax.random.normal(k_x, (B, T, n_embd), dtype=jnp.float32)

    # Parameters stored pre-transposed so the kernel computes x @ W directly
    # (PyTorch Linear does x @ W.T).
    wq = jax.random.normal(k_q, (num_heads, n_embd, head_size), dtype=jnp.float32) * 0.05
    wk = jax.random.normal(k_k, (num_heads, n_embd, head_size), dtype=jnp.float32) * 0.05
    wv = jax.random.normal(k_v, (num_heads, n_embd, head_size), dtype=jnp.float32) * 0.05
    wo = jax.random.normal(k_o, (n_embd, n_embd), dtype=jnp.float32) * 0.05
    bo = jax.random.normal(k_b, (1, n_embd), dtype=jnp.float32) * 0.05

    out = multi_head_attention(x, wq, wk, wv, wo, bo)
    out = jax.block_until_ready(out)

    ref = multi_head_attention_ref(x, wq, wk, wv, wo, bo)
    assert out.shape == (B, T, n_embd)
    # bf16 matmuls (f32 accumulation) + approximate EUP reciprocal in the softmax
    # normalization -> tolerance looser than a bit-exact f32 check.
    assert jnp.allclose(out, ref, atol=2e-2, rtol=2e-2), "mismatch vs pure-JAX reference"

    print("KERNEL_OK")
</pallas_src>

<mosaic_0001>
module attributes {stable_mosaic.version = 11 : i64} {
  func.func @mha_kernel(%arg0: i32, %arg1: memref<1x8x32xbf16, #tpu.memory_space<vmem>>, %arg2: memref<32x96xbf16, #tpu.memory_space<vmem>>, %arg3: memref<32x128xbf16, #tpu.memory_space<vmem>>, %arg4: memref<1x128xf32, #tpu.memory_space<vmem>>, %arg5: memref<1x8x128xf32, #tpu.memory_space<vmem>>, %arg6: memref<8x32xbf16, #tpu.memory_space<vmem>>) attributes {dimension_semantics = [#tpu.dimension_semantics<parallel>], iteration_bounds = array<i64: 2>, scalar_prefetch = 0 : i64, scratch_operands = 1 : i64, tpu.core_type = #tpu.core_type<tc>, window_params = [{transform_indices = @transform_0, window_bounds = array<i64: 1, 8, 32>}, {pipeline_mode = #tpu.pipeline_mode<synchronous>, transform_indices = @transform_1, window_bounds = array<i64: 32, 96>}, {pipeline_mode = #tpu.pipeline_mode<synchronous>, transform_indices = @transform_2, window_bounds = array<i64: 32, 128>}, {pipeline_mode = #tpu.pipeline_mode<synchronous>, transform_indices = @transform_3, window_bounds = array<i64: 1, 128>}, {transform_indices = @transform_4, window_bounds = array<i64: 1, 8, 128>}]} {
    %c0 = arith.constant 0 : index
    %c0_0 = arith.constant 0 : index
    %c0_1 = arith.constant 0 : index
    %0 = vector.load %arg1[%c0, %c0_0, %c0_1] : memref<1x8x32xbf16, #tpu.memory_space<vmem>>, vector<1x8x32xbf16>
    %1 = vector.shape_cast %0 : vector<1x8x32xbf16> to vector<8x32xbf16>
    %c0_2 = arith.constant 0 : index
    %c0_3 = arith.constant 0 : index
    %2 = vector.load %arg2[%c0_2, %c0_3] : memref<32x96xbf16, #tpu.memory_space<vmem>>, vector<32x96xbf16>
    %cst = arith.constant dense<0.000000e+00> : vector<8x96xf32>
    %3 = tpu.matmul %1, %2, %cst {dimension_numbers = #tpu.dot_dimension_numbers<[1], [0], [0], [1], [0, 0, 1, 1], [], []>} : vector<8x32xbf16>, vector<32x96xbf16>, vector<8x96xf32> -> vector<8x96xf32>
    %4 = arith.truncf %3 : vector<8x96xf32> to vector<8x96xbf16>
    %5 = vector.extract_strided_slice %4 {offsets = [0, 0], sizes = [8, 8], strides = [1, 1]} : vector<8x96xbf16> to vector<8x8xbf16>
    %6 = vector.shape_cast %5 : vector<8x8xbf16> to vector<1x8x8xbf16>
    %7 = vector.extract_strided_slice %4 {offsets = [0, 32], sizes = [8, 8], strides = [1, 1]} : vector<8x96xbf16> to vector<8x8xbf16>
    %8 = vector.shape_cast %7 : vector<8x8xbf16> to vector<1x8x8xbf16>
    %9 = vector.extract_strided_slice %4 {offsets = [0, 64], sizes = [8, 8], strides = [1, 1]} : vector<8x96xbf16> to vector<8x8xbf16>
    %10 = vector.shape_cast %9 : vector<8x8xbf16> to vector<1x8x8xbf16>
    %cst_4 = arith.constant dense<0.000000e+00> : vector<1x8x8xf32>
    %11 = tpu.matmul %6, %8, %cst_4 {dimension_numbers = #tpu.dot_dimension_numbers<[2], [2], [1], [1], [0, 0, 0, 1, 1, 1], [0], [0]>} : vector<1x8x8xbf16>, vector<1x8x8xbf16>, vector<1x8x8xf32> -> vector<1x8x8xf32>
    %cst_5 = arith.constant dense<0xFF800000> : vector<1x8xf32>
    %12 = vector.multi_reduction <maximumf>, %11, %cst_5 [2] : vector<1x8x8xf32> to vector<1x8xf32>
    %13 = vector.shape_cast %12 : vector<1x8xf32> to vector<1x8x1xf32>
    %14 = vector.broadcast %13 : vector<1x8x1xf32> to vector<1x8x8xf32>
    %15 = arith.subf %11, %14 : vector<1x8x8xf32>
    %16 = math.exp %15 : vector<1x8x8xf32>
    %cst_6 = arith.constant dense<0.000000e+00> : vector<1x8xf32>
    %17 = vector.multi_reduction <add>, %16, %cst_6 [2] : vector<1x8x8xf32> to vector<1x8xf32>
    %18 = vector.shape_cast %17 : vector<1x8xf32> to vector<1x8x1xf32>
    %19 = tpu.reciprocal %18 {approx = true} : vector<1x8x1xf32> -> vector<1x8x1xf32>
    %20 = vector.broadcast %19 : vector<1x8x1xf32> to vector<1x8x8xf32>
    %21 = arith.mulf %16, %20 : vector<1x8x8xf32>
    %22 = arith.truncf %21 : vector<1x8x8xf32> to vector<1x8x8xbf16>
    %cst_7 = arith.constant dense<0.000000e+00> : vector<1x8x8xf32>
    %23 = tpu.matmul %22, %10, %cst_7 {dimension_numbers = #tpu.dot_dimension_numbers<[2], [1], [1], [2], [0, 0, 0, 1, 1, 2], [0], [0]>} : vector<1x8x8xbf16>, vector<1x8x8xbf16>, vector<1x8x8xf32> -> vector<1x8x8xf32>
    %24 = vector.shape_cast %23 : vector<1x8x8xf32> to vector<8x8xf32>
    %25 = arith.truncf %24 : vector<8x8xf32> to vector<8x8xbf16>
    %c0_8 = arith.constant 0 : index
    %c0_9 = arith.constant 0 : index
    %26 = vector.load %arg6[%c0_8, %c0_9] : memref<8x32xbf16, #tpu.memory_space<vmem>>, vector<8x8xbf16>
    tpu.vector_store %arg6[%c0_8, %c0_9], %25 {strides = array<i32>} : memref<8x32xbf16, #tpu.memory_space<vmem>>, vector<8x8xbf16>,
    %27 = vector.extract_strided_slice %4 {offsets = [0, 8], sizes = [8, 8], strides = [1, 1]} : vector<8x96xbf16> to vector<8x8xbf16>
    %28 = vector.shape_cast %27 : vector<8x8xbf16> to vector<1x8x8xbf16>
    %29 = vector.extract_strided_slice %4 {offsets = [0, 40], sizes = [8, 8], strides = [1, 1]} : vector<8x96xbf16> to vector<8x8xbf16>
    %30 = vector.shape_cast %29 : vector<8x8xbf16> to vector<1x8x8xbf16>
    %31 = vector.extract_strided_slice %4 {offsets = [0, 72], sizes = [8, 8], strides = [1, 1]} : vector<8x96xbf16> to vector<8x8xbf16>
    %32 = vector.shape_cast %31 : vector<8x8xbf16> to vector<1x8x8xbf16>
    %cst_10 = arith.constant dense<0.000000e+00> : vector<1x8x8xf32>
    %33 = tpu.matmul %28, %30, %cst_10 {dimension_numbers = #tpu.dot_dimension_numbers<[2], [2], [1], [1], [0, 0, 0, 1, 1, 1], [0], [0]>} : vector<1x8x8xbf16>, vector<1x8x8xbf16>, vector<1x8x8xf32> -> vector<1x8x8xf32>
    %cst_11 = arith.constant dense<0xFF800000> : vector<1x8xf32>
    %34 = vector.multi_reduction <maximumf>, %33, %cst_11 [2] : vector<1x8x8xf32> to vector<1x8xf32>
    %35 = vector.shape_cast %34 : vector<1x8xf32> to vector<1x8x1xf32>
    %36 = vector.broadcast %35 : vector<1x8x1xf32> to vector<1x8x8xf32>
    %37 = arith.subf %33, %36 : vector<1x8x8xf32>
    %38 = math.exp %37 : vector<1x8x8xf32>
    %cst_12 = arith.constant dense<0.000000e+00> : vector<1x8xf32>
    %39 = vector.multi_reduction <add>, %38, %cst_12 [2] : vector<1x8x8xf32> to vector<1x8xf32>
    %40 = vector.shape_cast %39 : vector<1x8xf32> to vector<1x8x1xf32>
    %41 = tpu.reciprocal %40 {approx = true} : vector<1x8x1xf32> -> vector<1x8x1xf32>
    %42 = vector.broadcast %41 : vector<1x8x1xf32> to vector<1x8x8xf32>
    %43 = arith.mulf %38, %42 : vector<1x8x8xf32>
    %44 = arith.truncf %43 : vector<1x8x8xf32> to vector<1x8x8xbf16>
    %cst_13 = arith.constant dense<0.000000e+00> : vector<1x8x8xf32>
    %45 = tpu.matmul %44, %32, %cst_13 {dimension_numbers = #tpu.dot_dimension_numbers<[2], [1], [1], [2], [0, 0, 0, 1, 1, 2], [0], [0]>} : vector<1x8x8xbf16>, vector<1x8x8xbf16>, vector<1x8x8xf32> -> vector<1x8x8xf32>
    %46 = vector.shape_cast %45 : vector<1x8x8xf32> to vector<8x8xf32>
    %47 = arith.truncf %46 : vector<8x8xf32> to vector<8x8xbf16>
    %c0_14 = arith.constant 0 : index
    %c8 = arith.constant 8 : index
    %48 = vector.load %arg6[%c0_14, %c8] : memref<8x32xbf16, #tpu.memory_space<vmem>>, vector<8x8xbf16>
    tpu.vector_store %arg6[%c0_14, %c8], %47 {strides = array<i32>} : memref<8x32xbf16, #tpu.memory_space<vmem>>, vector<8x8xbf16>,
    %49 = vector.extract_strided_slice %4 {offsets = [0, 16], sizes = [8, 8], strides = [1, 1]} : vector<8x96xbf16> to vector<8x8xbf16>
    %50 = vector.shape_cast %49 : vector<8x8xbf16> to vector<1x8x8xbf16>
    %51 = vector.extract_strided_slice %4 {offsets = [0, 48], sizes = [8, 8], strides = [1, 1]} : vector<8x96xbf16> to vector<8x8xbf16>
    %52 = vector.shape_cast %51 : vector<8x8xbf16> to vector<1x8x8xbf16>
    %53 = vector.extract_strided_slice %4 {offsets = [0, 80], sizes = [8, 8], strides = [1, 1]} : vector<8x96xbf16> to vector<8x8xbf16>
    %54 = vector.shape_cast %53 : vector<8x8xbf16> to vector<1x8x8xbf16>
    %cst_15 = arith.constant dense<0.000000e+00> : vector<1x8x8xf32>
    %55 = tpu.matmul %50, %52, %cst_15 {dimension_numbers = #tpu.dot_dimension_numbers<[2], [2], [1], [1], [0, 0, 0, 1, 1, 1], [0], [0]>} : vector<1x8x8xbf16>, vector<1x8x8xbf16>, vector<1x8x8xf32> -> vector<1x8x8xf32>
    %cst_16 = arith.constant dense<0xFF800000> : vector<1x8xf32>
    %56 = vector.multi_reduction <maximumf>, %55, %cst_16 [2] : vector<1x8x8xf32> to vector<1x8xf32>
    %57 = vector.shape_cast %56 : vector<1x8xf32> to vector<1x8x1xf32>
    %58 = vector.broadcast %57 : vector<1x8x1xf32> to vector<1x8x8xf32>
    %59 = arith.subf %55, %58 : vector<1x8x8xf32>
    %60 = math.exp %59 : vector<1x8x8xf32>
    %cst_17 = arith.constant dense<0.000000e+00> : vector<1x8xf32>
    %61 = vector.multi_reduction <add>, %60, %cst_17 [2] : vector<1x8x8xf32> to vector<1x8xf32>
    %62 = vector.shape_cast %61 : vector<1x8xf32> to vector<1x8x1xf32>
    %63 = tpu.reciprocal %62 {approx = true} : vector<1x8x1xf32> -> vector<1x8x1xf32>
    %64 = vector.broadcast %63 : vector<1x8x1xf32> to vector<1x8x8xf32>
    %65 = arith.mulf %60, %64 : vector<1x8x8xf32>
    %66 = arith.truncf %65 : vector<1x8x8xf32> to vector<1x8x8xbf16>
    %cst_18 = arith.constant dense<0.000000e+00> : vector<1x8x8xf32>
    %67 = tpu.matmul %66, %54, %cst_18 {dimension_numbers = #tpu.dot_dimension_numbers<[2], [1], [1], [2], [0, 0, 0, 1, 1, 2], [0], [0]>} : vector<1x8x8xbf16>, vector<1x8x8xbf16>, vector<1x8x8xf32> -> vector<1x8x8xf32>
    %68 = vector.shape_cast %67 : vector<1x8x8xf32> to vector<8x8xf32>
    %69 = arith.truncf %68 : vector<8x8xf32> to vector<8x8xbf16>
    %c0_19 = arith.constant 0 : index
    %c16 = arith.constant 16 : index
    %70 = vector.load %arg6[%c0_19, %c16] : memref<8x32xbf16, #tpu.memory_space<vmem>>, vector<8x8xbf16>
    tpu.vector_store %arg6[%c0_19, %c16], %69 {strides = array<i32>} : memref<8x32xbf16, #tpu.memory_space<vmem>>, vector<8x8xbf16>,
    %71 = vector.extract_strided_slice %4 {offsets = [0, 24], sizes = [8, 8], strides = [1, 1]} : vector<8x96xbf16> to vector<8x8xbf16>
    %72 = vector.shape_cast %71 : vector<8x8xbf16> to vector<1x8x8xbf16>
    %73 = vector.extract_strided_slice %4 {offsets = [0, 56], sizes = [8, 8], strides = [1, 1]} : vector<8x96xbf16> to vector<8x8xbf16>
    %74 = vector.shape_cast %73 : vector<8x8xbf16> to vector<1x8x8xbf16>
    %75 = vector.extract_strided_slice %4 {offsets = [0, 88], sizes = [8, 8], strides = [1, 1]} : vector<8x96xbf16> to vector<8x8xbf16>
    %76 = vector.shape_cast %75 : vector<8x8xbf16> to vector<1x8x8xbf16>
    %cst_20 = arith.constant dense<0.000000e+00> : vector<1x8x8xf32>
    %77 = tpu.matmul %72, %74, %cst_20 {dimension_numbers = #tpu.dot_dimension_numbers<[2], [2], [1], [1], [0, 0, 0, 1, 1, 1], [0], [0]>} : vector<1x8x8xbf16>, vector<1x8x8xbf16>, vector<1x8x8xf32> -> vector<1x8x8xf32>
    %cst_21 = arith.constant dense<0xFF800000> : vector<1x8xf32>
    %78 = vector.multi_reduction <maximumf>, %77, %cst_21 [2] : vector<1x8x8xf32> to vector<1x8xf32>
    %79 = vector.shape_cast %78 : vector<1x8xf32> to vector<1x8x1xf32>
    %80 = vector.broadcast %79 : vector<1x8x1xf32> to vector<1x8x8xf32>
    %81 = arith.subf %77, %80 : vector<1x8x8xf32>
    %82 = math.exp %81 : vector<1x8x8xf32>
    %cst_22 = arith.constant dense<0.000000e+00> : vector<1x8xf32>
    %83 = vector.multi_reduction <add>, %82, %cst_22 [2] : vector<1x8x8xf32> to vector<1x8xf32>
    %84 = vector.shape_cast %83 : vector<1x8xf32> to vector<1x8x1xf32>
    %85 = tpu.reciprocal %84 {approx = true} : vector<1x8x1xf32> -> vector<1x8x1xf32>
    %86 = vector.broadcast %85 : vector<1x8x1xf32> to vector<1x8x8xf32>
    %87 = arith.mulf %82, %86 : vector<1x8x8xf32>
    %88 = arith.truncf %87 : vector<1x8x8xf32> to vector<1x8x8xbf16>
    %cst_23 = arith.constant dense<0.000000e+00> : vector<1x8x8xf32>
    %89 = tpu.matmul %88, %76, %cst_23 {dimension_numbers = #tpu.dot_dimension_numbers<[2], [1], [1], [2], [0, 0, 0, 1, 1, 2], [0], [0]>} : vector<1x8x8xbf16>, vector<1x8x8xbf16>, vector<1x8x8xf32> -> vector<1x8x8xf32>
    %90 = vector.shape_cast %89 : vector<1x8x8xf32> to vector<8x8xf32>
    %91 = arith.truncf %90 : vector<8x8xf32> to vector<8x8xbf16>
    %c0_24 = arith.constant 0 : index
    %c24 = arith.constant 24 : index
    %92 = vector.load %arg6[%c0_24, %c24] : memref<8x32xbf16, #tpu.memory_space<vmem>>, vector<8x8xbf16>
    tpu.vector_store %arg6[%c0_24, %c24], %91 {strides = array<i32>} : memref<8x32xbf16, #tpu.memory_space<vmem>>, vector<8x8xbf16>,
    %c0_25 = arith.constant 0 : index
    %c0_26 = arith.constant 0 : index
    %93 = vector.load %arg6[%c0_25, %c0_26] : memref<8x32xbf16, #tpu.memory_space<vmem>>, vector<8x32xbf16>
    %c0_27 = arith.constant 0 : index
    %c0_28 = arith.constant 0 : index
    %94 = vector.load %arg3[%c0_27, %c0_28] : memref<32x128xbf16, #tpu.memory_space<vmem>>, vector<32x128xbf16>
    %cst_29 = arith.constant dense<0.000000e+00> : vector<8x128xf32>
    %95 = tpu.matmul %93, %94, %cst_29 {dimension_numbers = #tpu.dot_dimension_numbers<[1], [0], [0], [1], [0, 0, 1, 1], [], []>} : vector<8x32xbf16>, vector<32x128xbf16>, vector<8x128xf32> -> vector<8x128xf32>
    %c0_30 = arith.constant 0 : index
    %c0_31 = arith.constant 0 : index
    %96 = vector.load %arg4[%c0_30, %c0_31] : memref<1x128xf32, #tpu.memory_space<vmem>>, vector<1x128xf32>
    %97 = vector.broadcast %96 : vector<1x128xf32> to vector<8x128xf32>
    %98 = arith.addf %95, %97 : vector<8x128xf32>
    %99 = vector.shape_cast %98 : vector<8x128xf32> to vector<1x8x128xf32>
    %c0_32 = arith.constant 0 : index
    %c0_33 = arith.constant 0 : index
    %c0_34 = arith.constant 0 : index
    %100 = vector.load %arg5[%c0_32, %c0_33, %c0_34] : memref<1x8x128xf32, #tpu.memory_space<vmem>>, vector<1x8x128xf32>
    tpu.vector_store %arg5[%c0_32, %c0_33, %c0_34], %99 {strides = array<i32>} : memref<1x8x128xf32, #tpu.memory_space<vmem>>, vector<1x8x128xf32>,
    return
  }
  func.func @transform_0(%arg0: i32) -> (i32, i32, i32) {
    %c0_i32 = arith.constant 0 : i32
    %c0_i32_0 = arith.constant 0 : i32
    %c0_i32_1 = arith.constant 0 : i32
    return %arg0, %c0_i32, %c0_i32_0 : i32, i32, i32
  }
  func.func @transform_1(%arg0: i32) -> (i32, i32) {
    %c0_i32 = arith.constant 0 : i32
    %c0_i32_0 = arith.constant 0 : i32
    %c0_i32_1 = arith.constant 0 : i32
    return %c0_i32, %c0_i32_0 : i32, i32
  }
  func.func @transform_2(%arg0: i32) -> (i32, i32) {
    %c0_i32 = arith.constant 0 : i32
    %c0_i32_0 = arith.constant 0 : i32
    %c0_i32_1 = arith.constant 0 : i32
    return %c0_i32, %c0_i32_0 : i32, i32
  }
  func.func @transform_3(%arg0: i32) -> (i32, i32) {
    %c0_i32 = arith.constant 0 : i32
    %c0_i32_0 = arith.constant 0 : i32
    %c0_i32_1 = arith.constant 0 : i32
    return %c0_i32, %c0_i32_0 : i32, i32
  }
  func.func @transform_4(%arg0: i32) -> (i32, i32, i32) {
    %c0_i32 = arith.constant 0 : i32
    %c0_i32_0 = arith.constant 0 : i32
    %c0_i32_1 = arith.constant 0 : i32
    return %arg0, %c0_i32, %c0_i32_0 : i32, i32, i32
  }
}

</mosaic_0001>

<llo_original>
// kernel: multi_head_attention.1
$region0: #{multi_head_attention.1}
  #allocation0 [shape = 'u32[]', space=smem, size = 0x4, offset = 0x4, fixed_abs, tag = 'smem constant byte address 0x4 - core index']
  #allocation1 [shape = 'u32[144,128]{1,0:T(1,128)}', space=vmem, size = 0x12000, scoped, tag = 'internal scratch']
  #allocation2 [shape = 'bf16[8,32]{1,0:T(8,128)(2,1)}', space=vmem, size = 0x800, scoped, tag = 'scratch operand']
  %s0 = inlined_call_operand.vmem [shape: bf16[2,8,32], index: 0, kind: input, shape index: {}]
  %s1 = inlined_call_operand.vmem [shape: bf16[32,96], index: 1, kind: input, shape index: {}]
  %s2 = inlined_call_operand.vmem [shape: bf16[32,128], index: 2, kind: input, shape index: {}]
  %s3 = inlined_call_operand.vmem [shape: f32[1,128], index: 3, kind: input, shape index: {}]
  %s4 = inlined_call_operand.hbm [shape: f32[2,8,128], index: 4, kind: output, shape index: {}]
  %s5 = sld [smem:[#allocation0]]
  $region49: #{multi_head_attention.1} parent=0
    _
  %s7 = ssub.s32 1, %s5
  %s8 = scalar_select 0, %s7, %s5
  $region1: #{multi_head_attention.1} parent=0
    #allocation3 [shape = 'u8[8192]{0}', space=vmem, size = 0x2000, scoped, tag = 'output window, operand 0']
    #allocation4 [shape = 's32[2]{0}', space=sflag, size = 0x8, scoped, tag = 'scoped memory for multi_head_attention.1']
    %9 = vsyncpa [#allocation4], 0
    %s10 = scalar_lea.sflag [#allocation4], 1
    %11 = vsyncpa %s10, 0
    loop: start=0, step=1, limit=4
    $region2: #{multi_head_attention.1} parent=1 // loop_pre_header
      _
    $region3: #{multi_head_attention.1} parent=1 // loop_header
      %s13 = sphi 0, %s17
      %p14 = scmp.ge.s32.totalorder %s13, 4
      %s23 = sphi 0, %s25
      %s26 = sphi 0, %s23
      %s27 = sphi 0, %s26
      %s43 = sphi 0, %s27
      %s47 = sphi 0, %s47
      %s49 = sphi 0, %s47
      %s50 = sphi 0, %s49
      %s64 = sphi 0, %s50
      %s68 = sphi 0, %s68
      %s70 = sphi 0, %s68
      %s71 = sphi 0, %s70
      %s85 = sphi 0, %s71
      %s89 = sphi 0, %s89
      %s91 = sphi 0, %s89
      %s92 = sphi 0, %s91
      %s106 = sphi 0, %s92
      %s112 = sphi 0, %s114
      %s115 = sphi 0, %s112
      %s116 = sphi 0, %s115
      %s132 = sphi 0, %s116
    $region4: #{multi_head_attention.1} parent=1 // loop_header_branch
      %16 = sbr.rel (%p14) target = $region8
    $region5: #{multi_head_attention.1} parent=1 // loop_body
      %s18 = ssub.s32 %s13, 1
      %s19 = ssub.s32 %s13, 2
      %s20 = sadd.s32 %s13, 1
      %s21 = ssub.s32 %s13, %s20
      %p22 = scmp.eq.s32.totalorder %s21, 0
      %s24 = sadd.s32 %s23, 1
      %s25 = scalar_select %p22, %s23, %s24
      %p28 = pneg %p22
      %p29 = scmp.eq.s32.totalorder %s13, 1
      %p30 = por %p28, %p29
      %p31 = scmp.ne.s32.totalorder %s23, %s26
      %p32 = scmp.eq.s32.totalorder %s13, 0
      %p33 = por %p31, %p32
      %p34 = scmp.ne.s32.totalorder %s23, %s26
      %p35 = scmp.eq.s32.totalorder %s18, 1
      %p36 = por %p34, %p35
      %p37 = scmp.ne.s32.totalorder %s26, %s27
      %p38 = scmp.eq.s32.totalorder %s18, 0
      %p39 = por %p37, %p38
      %p40 = scmp.ne.s32.totalorder %s26, %s27
      %p41 = scmp.eq.s32.totalorder %s19, 1
      %p42 = por %p40, %p41
      %p44 = scmp.ne.s32.totalorder %s27, %s43
      %p45 = scmp.eq.s32.totalorder %s19, 0
      %p46 = por %p44, %p45
      %s48 = sadd.s32 %s47, 1
      %p51 = scmp.eq.s32.totalorder %s13, 1
      %p52 = scmp.ne.s32.totalorder %s47, %s49
      %p53 = scmp.eq.s32.totalorder %s13, 0
      %p54 = por %p52, %p53
      %p55 = scmp.ne.s32.totalorder %s47, %s49
      %p56 = scmp.eq.s32.totalorder %s18, 1
      %p57 = por %p55, %p56
      %p58 = scmp.ne.s32.totalorder %s49, %s50
      %p59 = scmp.eq.s32.totalorder %s18, 0
      %p60 = por %p58, %p59
      %p61 = scmp.ne.s32.totalorder %s49, %s50
      %p62 = scmp.eq.s32.totalorder %s19, 1
      %p63 = por %p61, %p62
      %p65 = scmp.ne.s32.totalorder %s50, %s64
      %p66 = scmp.eq.s32.totalorder %s19, 0
      %p67 = por %p65, %p66
      %s69 = sadd.s32 %s68, 1
      %p72 = scmp.eq.s32.totalorder %s13, 1
      %p73 = scmp.ne.s32.totalorder %s68, %s70
      %p74 = scmp.eq.s32.totalorder %s13, 0
      %p75 = por %p73, %p74
      %p76 = scmp.ne.s32.totalorder %s68, %s70
      %p77 = scmp.eq.s32.totalorder %s18, 1
      %p78 = por %p76, %p77
      %p79 = scmp.ne.s32.totalorder %s70, %s71
      %p80 = scmp.eq.s32.totalorder %s18, 0
      %p81 = por %p79, %p80
      %p82 = scmp.ne.s32.totalorder %s70, %s71
      %p83 = scmp.eq.s32.totalorder %s19, 1
      %p84 = por %p82, %p83
      %p86 = scmp.ne.s32.totalorder %s71, %s85
      %p87 = scmp.eq.s32.totalorder %s19, 0
      %p88 = por %p86, %p87
      %s90 = sadd.s32 %s89, 1
      %p93 = scmp.eq.s32.totalorder %s13, 1
      %p94 = scmp.ne.s32.totalorder %s89, %s91
      %p95 = scmp.eq.s32.totalorder %s13, 0
      %p96 = por %p94, %p95
      %p97 = scmp.ne.s32.totalorder %s89, %s91
      %p98 = scmp.eq.s32.totalorder %s18, 1
      %p99 = por %p97, %p98
      %p100 = scmp.ne.s32.totalorder %s91, %s92
      %p101 = scmp.eq.s32.totalorder %s18, 0
      %p102 = por %p100, %p101
      %p103 = scmp.ne.s32.totalorder %s91, %s92
      %p104 = scmp.eq.s32.totalorder %s19, 1
      %p105 = por %p103, %p104
      %p107 = scmp.ne.s32.totalorder %s92, %s106
      %p108 = scmp.eq.s32.totalorder %s19, 0
      %p109 = por %p107, %p108
      %s110 = ssub.s32 %s13, %s20
      %p111 = scmp.eq.s32.totalorder %s110, 0
      %s113 = sadd.s32 %s112, 1
      %s114 = scalar_select %p111, %s112, %s113
      %p117 = pneg %p111
      %p118 = scmp.eq.s32.totalorder %s13, 1
      %p119 = por %p117, %p118
      %p120 = scmp.ne.s32.totalorder %s112, %s115
      %p121 = scmp.eq.s32.totalorder %s13, 0
      %p122 = por %p120, %p121
      %p123 = scmp.ne.s32.totalorder %s112, %s115
      %p124 = scmp.eq.s32.totalorder %s18, 1
      %p125 = por %p123, %p124
      %p126 = scmp.ne.s32.totalorder %s115, %s116
      %p127 = scmp.eq.s32.totalorder %s18, 0
      %p128 = por %p126, %p127
      %p129 = scmp.ne.s32.totalorder %s115, %s116
      %p130 = scmp.eq.s32.totalorder %s19, 1
      %p131 = por %p129, %p130
      %p133 = scmp.ne.s32.totalorder %s116, %s132
      %p134 = scmp.eq.s32.totalorder %s19, 0
      %p135 = por %p133, %p134
      %p136 = scmp.le.s32.totalorder 1, %s13
      %p137 = scmp.lt.s32.totalorder %s13, 3
      %p138 = pnand %p136, %p137
      %p139 = pneg %p138
      // Predicated region
      $region9: #{multi_head_attention.1} parent=5 // pred_check
        _
      $region10: #{multi_head_attention.1} parent=5 // pred_check_branch
        %141 = sbr.rel (%p138) target = $region12
      $region11: #{multi_head_attention.1} parent=5 // pred_region
        %s142 = ssub.s32 %s13, 1
        // Predicated region
        $region13: #{multi_head_attention.1} parent=11 // pred_check
          %p143 = pneg %p60
        $region14: #{multi_head_attention.1} parent=11 // pred_check_branch
          %145 = sbr.rel (%p143) target = $region16
        $region15: #{multi_head_attention.1} parent=11 // pred_region
          _
        $region16: #{multi_head_attention.1} parent=11 // pred_fallthru
          _
        // Predicated region
        $region17: #{multi_head_attention.1} parent=11 // pred_check
          %p146 = pneg %p81
        $region18: #{multi_head_attention.1} parent=11 // pred_check_branch
          %148 = sbr.rel (%p146) target = $region20
        $region19: #{multi_head_attention.1} parent=11 // pred_region
          _
        $region20: #{multi_head_attention.1} parent=11 // pred_fallthru
          _
        // Predicated region
        $region21: #{multi_head_attention.1} parent=11 // pred_check
          %p149 = pneg %p102
        $region22: #{multi_head_attention.1} parent=11 // pred_check_branch
          %151 = sbr.rel (%p149) target = $region24
        $region23: #{multi_head_attention.1} parent=11 // pred_region
          _
        $region24: #{multi_head_attention.1} parent=11 // pred_fallthru
          _
      $region12: #{multi_head_attention.1} parent=5 // pred_fallthru
        _
      %p152 = scmp.lt.s32.totalorder %s13, 2
      // Predicated region
      $region25: #{multi_head_attention.1} parent=5 // pred_check
        %p153 = pneg %p152
      $region26: #{multi_head_attention.1} parent=5 // pred_check_branch
        %155 = sbr.rel (%p153) target = $region28
      $region27: #{multi_head_attention.1} parent=5 // pred_region
        // Predicated region
        $region29: #{multi_head_attention.1} parent=27 // pred_check
          %p156 = pneg %p33
        $region30: #{multi_head_attention.1} parent=27 // pred_check_branch
          %158 = sbr.rel (%p156) target = $region32
        $region31: #{multi_head_attention.1} parent=27 // pred_region
          %p159 = scmp.lt.s32.totalorder %s13, 1
          %s160 = scalar_select %p159, %s13, 1
          %s161 = smul.addr %s160, 4
          %s162 = scalar_lea.vmem %s0, %s161
        $region32: #{multi_head_attention.1} parent=27 // pred_fallthru
          _
      $region28: #{multi_head_attention.1} parent=5 // pred_fallthru
        _
      %p163 = scmp.le.s32.totalorder 1, %s13
      %p164 = scmp.lt.s32.totalorder %s13, 3
      %p165 = pnand %p163, %p164
      %p166 = pneg %p165
      // Predicated region
      $region33: #{multi_head_attention.1} parent=5 // pred_check
        _
      $region34: #{multi_head_attention.1} parent=5 // pred_check_branch
        %168 = sbr.rel (%p165) target = $region36
      $region35: #{multi_head_attention.1} parent=5 // pred_region
        %s169 = ssub.s32 %s13, 1
        %p170 = scmp.lt.s32.totalorder %s18, 1
        %s171 = scalar_select %p170, %s18, 1
        %s172 = smul.addr %s171, 4
        %s173 = scalar_lea.vmem %s0, %s172
        %p174 = pneg %p39
        %p175 = pneg %p36
        %p176 = pneg %p60
        %p177 = pneg %p57
        %p178 = pneg %p81
        %p179 = pneg %p78
        %p180 = pneg %p102
        %p181 = pneg %p99
        %p182 = pneg %p128
        %p183 = pneg %p125
        %s184 = sand.u32 %s115, 1
        %s185 = scalar_lea.sflag [#allocation4], %s184
        %s186 = sand.u32 %s115, 1
        %s187 = smul.addr %s186, 8
        %s188 = scalar_lea.vmem [#allocation3], %s187
        %p189 = scmp.lt.s32.totalorder %s18, 1
        %s190 = scalar_select %p189, %s18, 1
        %s191 = smul.addr %s190, 4
        %s192 = scalar_lea.vmem %s0, %s191
        %v194 = vld [vmem:[%s192] sm:$0xf]
        %v195 = vld [vmem:[%s1] sm:$0xf]
        %v196 = vld [vmem:[%s1 + $0x4] sm:$0xf]
        %v197 = vld [vmem:[%s1 + $0x8] sm:$0xf]
        %v198 = vld [vmem:[%s1 + $0xc] sm:$0xf]
        %v203 = vunpack.c.l.b16 %v195
        %v204 = vunpack.c.l.b16 %v196
        %v205 = vunpack.c.l.b16 %v197
        %v206 = vunpack.c.l.b16 %v198
        %v207 = vpack.c.b16 %v204, %v203
        %v208 = vpack.c.b16 %v206, %v205
        %vm211 = vcmask 261120
        %v213 = vsel %vm211, %v194, 0
        %215 = vmatprep.subr.bf16.mxu0 0
        %216 = vmatpush1.bf16.msra.mxu0 %v207
        %217 = vmatprep.subr.bf16.mxu0 0
        %218 = vmatpush1.bf16.msra.mxu0 %v208
        %219 = vmatprep.subr.bf16.mxu0 0
        %220 = vmatpush1.bf16.msra.mxu0 0
        %221 = vmatprep.subr.bf16.mxu0 0
        %222 = vmatpush1.bf16.msra.mxu0 0
        %223 = vmatprep.subr.bf16.mxu0 0
        %224 = vmatpush1.bf16.msra.mxu0 0
        %225 = vmatprep.subr.bf16.mxu0 0
        %226 = vmatpush1.bf16.msra.mxu0 0
        %227 = vmatprep.subr.bf16.mxu0 0
        %228 = vmatpush1.bf16.msra.mxu0 0
        %229 = vmatprep.subr.bf16.mxu0 0
        %230 = vmatpush1.bf16.msra.mxu0 0
        %231 = vmatprep.subr.bf16.mxu0 0
        %232 = vmatpush1.bf16.msra.mxu0 0
        %233 = vmatprep.subr.bf16.mxu0 0
        %234 = vmatpush1.bf16.msra.mxu0 0
        %235 = vmatprep.subr.bf16.mxu0 0
        %236 = vmatpush1.bf16.msra.mxu0 0
        %237 = vmatprep.subr.bf16.mxu0 0
        %238 = vmatpush1.bf16.msra.mxu0 0
        %239 = vmatprep.subr.bf16.mxu0 0
        %240 = vmatpush1.bf16.msra.mxu0 0
        %241 = vmatprep.subr.bf16.mxu0 0
        %242 = vmatpush1.bf16.msra.mxu0 0
        %243 = vmatprep.subr.bf16.mxu0 0
        %244 = vmatpush1.bf16.msra.mxu0 0
        %245 = vmatprep.subr.bf16.mxu0 0
        %246 = vmatpush1.bf16.msra.mxu0 0
        %247 = vmatprep.mubr.bf16.mxu0 0
        %248 = vmatmul.mubr.bf16.gmra.mrb[0].mxu0 %v213
        %v249 = vpop.f32.mrb[0].mxu0
        %v250 = vadd.f32 0.0, %v249
        %v251 = vpop.f32.mrb[0].mxu0
        %v252 = vpop.f32.mrb[0].mxu0
        %v253 = vpop.f32.mrb[0].mxu0
        %254 = vdwg.mxu0
        %v255 = vpack.c.bf16 %v250, %v250
        %257 = vrot.lane.b32.xlu0 %v255, 96
        %v258 = vpop.permute.xlu0 %257
        %vm259 = vcmask 64512
        %v261 = vsel %vm259, %v255, 0
        %v264 = vsel %vm259, %v258, 0
        %266 = vmatprep.subr.bf16.mxu0 0
        %267 = vmatpush1.bf16.xpose.msra.mxu0 %v264
        %268 = vmatprep.subr.bf16.mxu0 0
        %269 = vmatpush1.bf16.xpose.msra.mxu0 0
        %270 = vmatprep.subr.bf16.mxu0 0
        %271 = vmatpush1.bf16.xpose.msra.mxu0 0
        %272 = vmatprep.subr.bf16.mxu0 0
        %273 = vmatpush1.bf16.xpose.msra.mxu0 0
        %274 = vmatprep.subr.bf16.mxu0 0
        %275 = vmatpush1.bf16.xpose.msra.mxu0 0
        %276 = vmatprep.subr.bf16.mxu0 0
        %277 = vmatpush1.bf16.xpose.msra.mxu0 0
        %278 = vmatprep.subr.bf16.mxu0 0
        %279 = vmatpush1.bf16.xpose.msra.mxu0 0
        %280 = vmatprep.subr.bf16.mxu0 0
        %281 = vmatpush1.bf16.xpose.msra.mxu0 0
        %282 = vmatprep.subr.bf16.mxu0 0
        %283 = vmatpush1.bf16.xpose.msra.mxu0 0
        %284 = vmatprep.subr.bf16.mxu0 0
        %285 = vmatpush1.bf16.xpose.msra.mxu0 0
        %286 = vmatprep.subr.bf16.mxu0 0
        %287 = vmatpush1.bf16.xpose.msra.mxu0 0
        %288 = vmatprep.subr.bf16.mxu0 0
        %289 = vmatpush1.bf16.xpose.msra.mxu0 0
        %290 = vmatprep.subr.bf16.mxu0 0
        %291 = vmatpush1.bf16.xpose.msra.mxu0 0
        %292 = vmatprep.subr.bf16.mxu0 0
        %293 = vmatpush1.bf16.xpose.msra.mxu0 0
        %294 = vmatprep.subr.bf16.mxu0 0
        %295 = vmatpush1.bf16.xpose.msra.mxu0 0
        %296 = vmatprep.subr.bf16.mxu0 0
        %297 = vmatpush1.bf16.xpose.msra.mxu0 0
        %298 = vmatprep.mubr.bf16.mxu0 0
        %299 = vmatmul.mubr.bf16.gmra.mrb[0].mxu0 %v261
        %v300 = vpop.f32.mrb[0].mxu0
        %v301 = vadd.f32 0.0, %v300
        %v302 = vpop.f32.mrb[0].mxu0
        %v303 = vpop.f32.mrb[0].mxu0
        %v304 = vpop.f32.mrb[0].mxu0
        %305 = vdwg.mxu0
        %v306 = vsel %vm259, %v301, -inf
        %307 = vmax.xlane.f32.xlu0 %v306
        %v308 = vpop.xlane.xlu0 %307
        %v309 = vsub.f32 %v301, %v308
        %v310 = vmul.f32 %v309, 1.442695
        %v311 = vpow.pop %v310
        %v312 = vsel %vm259, %v311, 0.0
        %313 = vadd.xlane.f32.xlu0 %v312
        %v314 = vpop.xlane.xlu0 %313
        %v315 = vrcp.pop %v314
        %v316 = vmul.f32 %v311, %v315
        %v317 = vpack.c.bf16 %v316, %v316
        %318 = vrot.lane.b32.xlu0 %v255, 64
        %v319 = vpop.permute.xlu0 %318
        %v321 = vsel %vm259, %v317, 0
        %vm323 = vcmask 1043456
        %v325 = vsel %vm323, %v319, 0
        %327 = vmatprep.subr.bf16.mxu0 0
        %328 = vmatpush1.bf16.msra.mxu0 %v325
        %329 = vmatprep.subr.bf16.mxu0 0
        %330 = vmatpush1.bf16.msra.mxu0 0
        %331 = vmatprep.subr.bf16.mxu0 0
        %332 = vmatpush1.bf16.msra.mxu0 0
        %333 = vmatprep.subr.bf16.mxu0 0
        %334 = vmatpush1.bf16.msra.mxu0 0
        %335 = vmatprep.subr.bf16.mxu0 0
        %336 = vmatpush1.bf16.msra.mxu0 0
        %337 = vmatprep.subr.bf16.mxu0 0
        %338 = vmatpush1.bf16.msra.mxu0 0
        %339 = vmatprep.subr.bf16.mxu0 0
        %340 = vmatpush1.bf16.msra.mxu0 0
        %341 = vmatprep.subr.bf16.mxu0 0
        %342 = vmatpush1.bf16.msra.mxu0 0
        %343 = vmatprep.subr.bf16.mxu0 0
        %344 = vmatpush1.bf16.msra.mxu0 0
        %345 = vmatprep.subr.bf16.mxu0 0
        %346 = vmatpush1.bf16.msra.mxu0 0
        %347 = vmatprep.subr.bf16.mxu0 0
        %348 = vmatpush1.bf16.msra.mxu0 0
        %349 = vmatprep.subr.bf16.mxu0 0
        %350 = vmatpush1.bf16.msra.mxu0 0
        %351 = vmatprep.subr.bf16.mxu0 0
        %352 = vmatpush1.bf16.msra.mxu0 0
        %353 = vmatprep.subr.bf16.mxu0 0
        %354 = vmatpush1.bf16.msra.mxu0 0
        %355 = vmatprep.subr.bf16.mxu0 0
        %356 = vmatpush1.bf16.msra.mxu0 0
        %357 = vmatprep.subr.bf16.mxu0 0
        %358 = vmatpush1.bf16.msra.mxu0 0
        %359 = vmatprep.mubr.bf16.mxu0 0
        %360 = vmatmul.mubr.bf16.gmra.mrb[0].mxu0 %v321
        %v361 = vpop.f32.mrb[0].mxu0
        %v362 = vadd.f32 0.0, %v361
        %v363 = vpop.f32.mrb[0].mxu0
        %v364 = vpop.f32.mrb[0].mxu0
        %v365 = vpop.f32.mrb[0].mxu0
        %366 = vdwg.mxu0
        %v367 = vpack.c.bf16 %v362, %v362
        %vm368 = vcmask 60416
        %369 = vst.msk [vmem:[#allocation2] sm:$0xf] %vm368, %v367
        %370 = vrot.lane.b32.xlu0 %v255, 120
        %v371 = vpop.permute.xlu0 %370
        %372 = vrot.lane.b32.xlu0 %v255, 88
        %v373 = vpop.permute.xlu0 %372
        %v375 = vsel %vm259, %v371, 0
        %v378 = vsel %vm259, %v373, 0
        %380 = vmatprep.subr.bf16.mxu0 0
        %381 = vmatpush1.bf16.xpose.msra.mxu0 %v378
        %382 = vmatprep.subr.bf16.mxu0 0
        %383 = vmatpush1.bf16.xpose.msra.mxu0 0
        %384 = vmatprep.subr.bf16.mxu0 0
        %385 = vmatpush1.bf16.xpose.msra.mxu0 0
        %386 = vmatprep.subr.bf16.mxu0 0
        %387 = vmatpush1.bf16.xpose.msra.mxu0 0
        %388 = vmatprep.subr.bf16.mxu0 0
        %389 = vmatpush1.bf16.xpose.msra.mxu0 0
        %390 = vmatprep.subr.bf16.mxu0 0
        %391 = vmatpush1.bf16.xpose.msra.mxu0 0
        %392 = vmatprep.subr.bf16.mxu0 0
        %393 = vmatpush1.bf16.xpose.msra.mxu0 0
        %394 = vmatprep.subr.bf16.mxu0 0
        %395 = vmatpush1.bf16.xpose.msra.mxu0 0
        %396 = vmatprep.subr.bf16.mxu0 0
        %397 = vmatpush1.bf16.xpose.msra.mxu0 0
        %398 = vmatprep.subr.bf16.mxu0 0
        %399 = vmatpush1.bf16.xpose.msra.mxu0 0
        %400 = vmatprep.subr.bf16.mxu0 0
        %401 = vmatpush1.bf16.xpose.msra.mxu0 0
        %402 = vmatprep.subr.bf16.mxu0 0
        %403 = vmatpush1.bf16.xpose.msra.mxu0 0
        %404 = vmatprep.subr.bf16.mxu0 0
        %405 = vmatpush1.bf16.xpose.msra.mxu0 0
        %406 = vmatprep.subr.bf16.mxu0 0
        %407 = vmatpush1.bf16.xpose.msra.mxu0 0
        %408 = vmatprep.subr.bf16.mxu0 0
        %409 = vmatpush1.bf16.xpose.msra.mxu0 0
        %410 = vmatprep.subr.bf16.mxu0 0
        %411 = vmatpush1.bf16.xpose.msra.mxu0 0
        %412 = vmatprep.mubr.bf16.mxu0 0
        %413 = vmatmul.mubr.bf16.gmra.mrb[0].mxu0 %v375
        %v414 = vpop.f32.mrb[0].mxu0
        %v415 = vadd.f32 0.0, %v414
        %v416 = vpop.f32.mrb[0].mxu0
        %v417 = vpop.f32.mrb[0].mxu0
        %v418 = vpop.f32.mrb[0].mxu0
        %419 = vdwg.mxu0
        %v420 = vsel %vm259, %v415, -inf
        %421 = vmax.xlane.f32.xlu0 %v420
        %v422 = vpop.xlane.xlu0 %421
        %v423 = vsub.f32 %v415, %v422
        %v424 = vmul.f32 %v423, 1.442695
        %v425 = vpow.pop %v424
        %v426 = vsel %vm259, %v425, 0.0
        %427 = vadd.xlane.f32.xlu0 %v426
        %v428 = vpop.xlane.xlu0 %427
        %v429 = vrcp.pop %v428
        %v430 = vmul.f32 %v425, %v429
        %v431 = vpack.c.bf16 %v430, %v430
        %432 = vrot.lane.b32.xlu0 %v255, 56
        %v433 = vpop.permute.xlu0 %432
        %v435 = vsel %vm259, %v431, 0
        %v438 = vsel %vm323, %v433, 0
        %440 = vmatprep.subr.bf16.mxu0 0
        %441 = vmatpush1.bf16.msra.mxu0 %v438
        %442 = vmatprep.subr.bf16.mxu0 0
        %443 = vmatpush1.bf16.msra.mxu0 0
        %444 = vmatprep.subr.bf16.mxu0 0
        %445 = vmatpush1.bf16.msra.mxu0 0
        %446 = vmatprep.subr.bf16.mxu0 0
        %447 = vmatpush1.bf16.msra.mxu0 0
        %448 = vmatprep.subr.bf16.mxu0 0
        %449 = vmatpush1.bf16.msra.mxu0 0
        %450 = vmatprep.subr.bf16.mxu0 0
        %451 = vmatpush1.bf16.msra.mxu0 0
        %452 = vmatprep.subr.bf16.mxu0 0
        %453 = vmatpush1.bf16.msra.mxu0 0
        %454 = vmatprep.subr.bf16.mxu0 0
        %455 = vmatpush1.bf16.msra.mxu0 0
        %456 = vmatprep.subr.bf16.mxu0 0
        %457 = vmatpush1.bf16.msra.mxu0 0
        %458 = vmatprep.subr.bf16.mxu0 0
        %459 = vmatpush1.bf16.msra.mxu0 0
        %460 = vmatprep.subr.bf16.mxu0 0
        %461 = vmatpush1.bf16.msra.mxu0 0
        %462 = vmatprep.subr.bf16.mxu0 0
        %463 = vmatpush1.bf16.msra.mxu0 0
        %464 = vmatprep.subr.bf16.mxu0 0
        %465 = vmatpush1.bf16.msra.mxu0 0
        %466 = vmatprep.subr.bf16.mxu0 0
        %467 = vmatpush1.bf16.msra.mxu0 0
        %468 = vmatprep.subr.bf16.mxu0 0
        %469 = vmatpush1.bf16.msra.mxu0 0
        %470 = vmatprep.subr.bf16.mxu0 0
        %471 = vmatpush1.bf16.msra.mxu0 0
        %472 = vmatprep.mubr.bf16.mxu0 0
        %473 = vmatmul.mubr.bf16.gmra.mrb[0].mxu0 %v435
        %v474 = vpop.f32.mrb[0].mxu0
        %v475 = vadd.f32 0.0, %v474
        %v476 = vpop.f32.mrb[0].mxu0
        %v477 = vpop.f32.mrb[0].mxu0
        %v478 = vpop.f32.mrb[0].mxu0
        %479 = vdwg.mxu0
        %v480 = vpack.c.bf16 %v475, %v475
        %v482 = vunpack.c.l.b16 %v480
        %v483 = vpack.c.b16 %v482, %v482
        %484 = vrot.lane.b32.xlu0 %v483, 8
        %v485 = vpop.permute.xlu0 %484
        %vm487 = vcmask 126016
        %488 = vst.msk [vmem:[#allocation2] sm:$0xf] %vm487, %v485
        %489 = vrot.lane.b32.xlu0 %v255, 112
        %v490 = vpop.permute.xlu0 %489
        %491 = vrot.lane.b32.xlu0 %v255, 80
        %v492 = vpop.permute.xlu0 %491
        %v494 = vsel %vm259, %v490, 0
        %v497 = vsel %vm259, %v492, 0
        %499 = vmatprep.subr.bf16.mxu0 0
        %500 = vmatpush1.bf16.xpose.msra.mxu0 %v497
        %501 = vmatprep.subr.bf16.mxu0 0
        %502 = vmatpush1.bf16.xpose.msra.mxu0 0
        %503 = vmatprep.subr.bf16.mxu0 0
        %504 = vmatpush1.bf16.xpose.msra.mxu0 0
        %505 = vmatprep.subr.bf16.mxu0 0
        %506 = vmatpush1.bf16.xpose.msra.mxu0 0
        %507 = vmatprep.subr.bf16.mxu0 0
        %508 = vmatpush1.bf16.xpose.msra.mxu0 0
        %509 = vmatprep.subr.bf16.mxu0 0
        %510 = vmatpush1.bf16.xpose.msra.mxu0 0
        %511 = vmatprep.subr.bf16.mxu0 0
        %512 = vmatpush1.bf16.xpose.msra.mxu0 0
        %513 = vmatprep.subr.bf16.mxu0 0
        %514 = vmatpush1.bf16.xpose.msra.mxu0 0
        %515 = vmatprep.subr.bf16.mxu0 0
        %516 = vmatpush1.bf16.xpose.msra.mxu0 0
        %517 = vmatprep.subr.bf16.mxu0 0
        %518 = vmatpush1.bf16.xpose.msra.mxu0 0
        %519 = vmatprep.subr.bf16.mxu0 0
        %520 = vmatpush1.bf16.xpose.msra.mxu0 0
        %521 = vmatprep.subr.bf16.mxu0 0
        %522 = vmatpush1.bf16.xpose.msra.mxu0 0
        %523 = vmatprep.subr.bf16.mxu0 0
        %524 = vmatpush1.bf16.xpose.msra.mxu0 0
        %525 = vmatprep.subr.bf16.mxu0 0
        %526 = vmatpush1.bf16.xpose.msra.mxu0 0
        %527 = vmatprep.subr.bf16.mxu0 0
        %528 = vmatpush1.bf16.xpose.msra.mxu0 0
        %529 = vmatprep.subr.bf16.mxu0 0
        %530 = vmatpush1.bf16.xpose.msra.mxu0 0
        %531 = vmatprep.mubr.bf16.mxu0 0
        %532 = vmatmul.mubr.bf16.gmra.mrb[0].mxu0 %v494
        %v533 = vpop.f32.mrb[0].mxu0
        %v534 = vadd.f32 0.0, %v533
        %v535 = vpop.f32.mrb[0].mxu0
        %v536 = vpop.f32.mrb[0].mxu0
        %v537 = vpop.f32.mrb[0].mxu0
        %538 = vdwg.mxu0
        %v539 = vsel %vm259, %v534, -inf
        %540 = vmax.xlane.f32.xlu0 %v539
        %v541 = vpop.xlane.xlu0 %540
        %v542 = vsub.f32 %v534, %v541
        %v543 = vmul.f32 %v542, 1.442695
        %v544 = vpow.pop %v543
        %v545 = vsel %vm259, %v544, 0.0
        %546 = vadd.xlane.f32.xlu0 %v545
        %v547 = vpop.xlane.xlu0 %546
        %v548 = vrcp.pop %v547
        %v549 = vmul.f32 %v544, %v548
        %v550 = vpack.c.bf16 %v549, %v549
        %551 = vrot.lane.b32.xlu0 %v255, 48
        %v552 = vpop.permute.xlu0 %551
        %v554 = vsel %vm259, %v550, 0
        %v557 = vsel %vm323, %v552, 0
        %559 = vmatprep.subr.bf16.mxu0 0
        %560 = vmatpush1.bf16.msra.mxu0 %v557
        %561 = vmatprep.subr.bf16.mxu0 0
        %562 = vmatpush1.bf16.msra.mxu0 0
        %563 = vmatprep.subr.bf16.mxu0 0
        %564 = vmatpush1.bf16.msra.mxu0 0
        %565 = vmatprep.subr.bf16.mxu0 0
        %566 = vmatpush1.bf16.msra.mxu0 0
        %567 = vmatprep.subr.bf16.mxu0 0
        %568 = vmatpush1.bf16.msra.mxu0 0
        %569 = vmatprep.subr.bf16.mxu0 0
        %570 = vmatpush1.bf16.msra.mxu0 0
        %571 = vmatprep.subr.bf16.mxu0 0
        %572 = vmatpush1.bf16.msra.mxu0 0
        %573 = vmatprep.subr.bf16.mxu0 0
        %574 = vmatpush1.bf16.msra.mxu0 0
        %575 = vmatprep.subr.bf16.mxu0 0
        %576 = vmatpush1.bf16.msra.mxu0 0
        %577 = vmatprep.subr.bf16.mxu0 0
        %578 = vmatpush1.bf16.msra.mxu0 0
        %579 = vmatprep.subr.bf16.mxu0 0
        %580 = vmatpush1.bf16.msra.mxu0 0
        %581 = vmatprep.subr.bf16.mxu0 0
        %582 = vmatpush1.bf16.msra.mxu0 0
        %583 = vmatprep.subr.bf16.mxu0 0
        %584 = vmatpush1.bf16.msra.mxu0 0
        %585 = vmatprep.subr.bf16.mxu0 0
        %586 = vmatpush1.bf16.msra.mxu0 0
        %587 = vmatprep.subr.bf16.mxu0 0
        %588 = vmatpush1.bf16.msra.mxu0 0
        %589 = vmatprep.subr.bf16.mxu0 0
        %590 = vmatpush1.bf16.msra.mxu0 0
        %591 = vmatprep.mubr.bf16.mxu0 0
        %592 = vmatmul.mubr.bf16.gmra.mrb[0].mxu0 %v554
        %v593 = vpop.f32.mrb[0].mxu0
        %v594 = vadd.f32 0.0, %v593
        %v595 = vpop.f32.mrb[0].mxu0
        %v596 = vpop.f32.mrb[0].mxu0
        %v597 = vpop.f32.mrb[0].mxu0
        %598 = vdwg.mxu0
        %v599 = vpack.c.bf16 %v594, %v594
        %v601 = vunpack.c.l.b16 %v599
        %v602 = vpack.c.b16 %v601, %v601
        %603 = vrot.lane.b32.xlu0 %v602, 16
        %v604 = vpop.permute.xlu0 %603
        %vm606 = vcmask 191616
        %607 = vst.msk [vmem:[#allocation2] sm:$0xf] %vm606, %v604
        %608 = vrot.lane.b32.xlu0 %v255, 104
        %v609 = vpop.permute.xlu0 %608
        %610 = vrot.lane.b32.xlu0 %v255, 72
        %v611 = vpop.permute.xlu0 %610
        %v613 = vsel %vm259, %v609, 0
        %v616 = vsel %vm259, %v611, 0
        %618 = vmatprep.subr.bf16.mxu0 0
        %619 = vmatpush1.bf16.xpose.msra.mxu0 %v616
        %620 = vmatprep.subr.bf16.mxu0 0
        %621 = vmatpush1.bf16.xpose.msra.mxu0 0
        %622 = vmatprep.subr.bf16.mxu0 0
        %623 = vmatpush1.bf16.xpose.msra.mxu0 0
        %624 = vmatprep.subr.bf16.mxu0 0
        %625 = vmatpush1.bf16.xpose.msra.mxu0 0
        %626 = vmatprep.subr.bf16.mxu0 0
        %627 = vmatpush1.bf16.xpose.msra.mxu0 0
        %628 = vmatprep.subr.bf16.mxu0 0
        %629 = vmatpush1.bf16.xpose.msra.mxu0 0
        %630 = vmatprep.subr.bf16.mxu0 0
        %631 = vmatpush1.bf16.xpose.msra.mxu0 0
        %632 = vmatprep.subr.bf16.mxu0 0
        %633 = vmatpush1.bf16.xpose.msra.mxu0 0
        %634 = vmatprep.subr.bf16.mxu0 0
        %635 = vmatpush1.bf16.xpose.msra.mxu0 0
        %636 = vmatprep.subr.bf16.mxu0 0
        %637 = vmatpush1.bf16.xpose.msra.mxu0 0
        %638 = vmatprep.subr.bf16.mxu0 0
        %639 = vmatpush1.bf16.xpose.msra.mxu0 0
        %640 = vmatprep.subr.bf16.mxu0 0
        %641 = vmatpush1.bf16.xpose.msra.mxu0 0
        %642 = vmatprep.subr.bf16.mxu0 0
        %643 = vmatpush1.bf16.xpose.msra.mxu0 0
        %644 = vmatprep.subr.bf16.mxu0 0
        %645 = vmatpush1.bf16.xpose.msra.mxu0 0
        %646 = vmatprep.subr.bf16.mxu0 0
        %647 = vmatpush1.bf16.xpose.msra.mxu0 0
        %648 = vmatprep.subr.bf16.mxu0 0
        %649 = vmatpush1.bf16.xpose.msra.mxu0 0
        %650 = vmatprep.mubr.bf16.mxu0 0
        %651 = vmatmul.mubr.bf16.gmra.mrb[0].mxu0 %v613
        %v652 = vpop.f32.mrb[0].mxu0
        %v653 = vadd.f32 0.0, %v652
        %v654 = vpop.f32.mrb[0].mxu0
        %v655 = vpop.f32.mrb[0].mxu0
        %v656 = vpop.f32.mrb[0].mxu0
        %657 = vdwg.mxu0
        %v658 = vsel %vm259, %v653, -inf
        %659 = vmax.xlane.f32.xlu0 %v658
        %v660 = vpop.xlane.xlu0 %659
        %v661 = vsub.f32 %v653, %v660
        %v662 = vmul.f32 %v661, 1.442695
        %v663 = vpow.pop %v662
        %v664 = vsel %vm259, %v663, 0.0
        %665 = vadd.xlane.f32.xlu0 %v664
        %v666 = vpop.xlane.xlu0 %665
        %v667 = vrcp.pop %v666
        %v668 = vmul.f32 %v663, %v667
        %v669 = vpack.c.bf16 %v668, %v668
        %670 = vrot.lane.b32.xlu0 %v255, 40
        %v671 = vpop.permute.xlu0 %670
        %v673 = vsel %vm259, %v669, 0
        %v676 = vsel %vm323, %v671, 0
        %678 = vmatprep.subr.bf16.mxu0 0
        %679 = vmatpush1.bf16.msra.mxu0 %v676
        %680 = vmatprep.subr.bf16.mxu0 0
        %681 = vmatpush1.bf16.msra.mxu0 0
        %682 = vmatprep.subr.bf16.mxu0 0
        %683 = vmatpush1.bf16.msra.mxu0 0
        %684 = vmatprep.subr.bf16.mxu0 0
        %685 = vmatpush1.bf16.msra.mxu0 0
        %686 = vmatprep.subr.bf16.mxu0 0
        %687 = vmatpush1.bf16.msra.mxu0 0
        %688 = vmatprep.subr.bf16.mxu0 0
        %689 = vmatpush1.bf16.msra.mxu0 0
        %690 = vmatprep.subr.bf16.mxu0 0
        %691 = vmatpush1.bf16.msra.mxu0 0
        %692 = vmatprep.subr.bf16.mxu0 0
        %693 = vmatpush1.bf16.msra.mxu0 0
        %694 = vmatprep.subr.bf16.mxu0 0
        %695 = vmatpush1.bf16.msra.mxu0 0
        %696 = vmatprep.subr.bf16.mxu0 0
        %697 = vmatpush1.bf16.msra.mxu0 0
        %698 = vmatprep.subr.bf16.mxu0 0
        %699 = vmatpush1.bf16.msra.mxu0 0
        %700 = vmatprep.subr.bf16.mxu0 0
        %701 = vmatpush1.bf16.msra.mxu0 0
        %702 = vmatprep.subr.bf16.mxu0 0
        %703 = vmatpush1.bf16.msra.mxu0 0
        %704 = vmatprep.subr.bf16.mxu0 0
        %705 = vmatpush1.bf16.msra.mxu0 0
        %706 = vmatprep.subr.bf16.mxu0 0
        %707 = vmatpush1.bf16.msra.mxu0 0
        %708 = vmatprep.subr.bf16.mxu0 0
        %709 = vmatpush1.bf16.msra.mxu0 0
        %710 = vmatprep.mubr.bf16.mxu0 0
        %711 = vmatmul.mubr.bf16.gmra.mrb[0].mxu0 %v673
        %v712 = vpop.f32.mrb[0].mxu0
        %v713 = vadd.f32 0.0, %v712
        %v714 = vpop.f32.mrb[0].mxu0
        %v715 = vpop.f32.mrb[0].mxu0
        %v716 = vpop.f32.mrb[0].mxu0
        %717 = vdwg.mxu0
        %v718 = vpack.c.bf16 %v713, %v713
        %v720 = vunpack.c.l.b16 %v718
        %v721 = vpack.c.b16 %v720, %v720
        %722 = vrot.lane.b32.xlu0 %v721, 24
        %v723 = vpop.permute.xlu0 %722
        %vm725 = vcmask 257216
        %726 = vst.msk [vmem:[#allocation2] sm:$0xf] %vm725, %v723
        %v727 = vld [vmem:[#allocation2] sm:$0xf]
        %v728 = vld [vmem:[%s2] sm:$0xf]
        %v729 = vld [vmem:[%s2 + $0x4] sm:$0xf]
        %v730 = vld [vmem:[%s2 + $0x8] sm:$0xf]
        %v731 = vld [vmem:[%s2 + $0xc] sm:$0xf]
        %v732 = vld [vmem:[%s3] sm:$0x1]
        %v734 = vlaneseq
        %v735 = vshrl.u32 %v734, 7
        %v736 = vsub.s32 0, %v735
        %v737 = vrot.slane %v732, %v736
        %v743 = vunpack.c.l.b16 %v728
        %v744 = vunpack.c.l.b16 %v729
        %v745 = vunpack.c.l.b16 %v730
        %v746 = vunpack.c.l.b16 %v731
        %v747 = vpack.c.b16 %v744, %v743
        %v748 = vpack.c.b16 %v746, %v745
        %v752 = vsel %vm211, %v727, 0
        %754 = vmatprep.subr.bf16.mxu0 0
        %755 = vmatpush1.bf16.msra.mxu0 %v747
        %756 = vmatprep.subr.bf16.mxu0 0
        %757 = vmatpush1.bf16.msra.mxu0 %v748
        %758 = vmatprep.subr.bf16.mxu0 0
        %759 = vmatpush1.bf16.msra.mxu0 0
        %760 = vmatprep.subr.bf16.mxu0 0
        %761 = vmatpush1.bf16.msra.mxu0 0
        %762 = vmatprep.subr.bf16.mxu0 0
        %763 = vmatpush1.bf16.msra.mxu0 0
        %764 = vmatprep.subr.bf16.mxu0 0
        %765 = vmatpush1.bf16.msra.mxu0 0
        %766 = vmatprep.subr.bf16.mxu0 0
        %767 = vmatpush1.bf16.msra.mxu0 0
        %768 = vmatprep.subr.bf16.mxu0 0
        %769 = vmatpush1.bf16.msra.mxu0 0
        %770 = vmatprep.subr.bf16.mxu0 0
        %771 = vmatpush1.bf16.msra.mxu0 0
        %772 = vmatprep.subr.bf16.mxu0 0
        %773 = vmatpush1.bf16.msra.mxu0 0
        %774 = vmatprep.subr.bf16.mxu0 0
        %775 = vmatpush1.bf16.msra.mxu0 0
        %776 = vmatprep.subr.bf16.mxu0 0
        %777 = vmatpush1.bf16.msra.mxu0 0
        %778 = vmatprep.subr.bf16.mxu0 0
        %779 = vmatpush1.bf16.msra.mxu0 0
        %780 = vmatprep.subr.bf16.mxu0 0
        %781 = vmatpush1.bf16.msra.mxu0 0
        %782 = vmatprep.subr.bf16.mxu0 0
        %783 = vmatpush1.bf16.msra.mxu0 0
        %784 = vmatprep.subr.bf16.mxu0 0
        %785 = vmatpush1.bf16.msra.mxu0 0
        %786 = vmatprep.mubr.bf16.mxu0 0
        %787 = vmatmul.mubr.bf16.gmra.mrb[0].mxu0 %v752
        %v788 = vpop.f32.mrb[0].mxu0
        %v789 = vadd.f32 %v737, %v788
        %v790 = vpop.f32.mrb[0].mxu0
        %v791 = vpop.f32.mrb[0].mxu0
        %v792 = vpop.f32.mrb[0].mxu0
        %793 = vdwg.mxu0
        %794 = vst [vmem:[%s188] sm:$0xff] %v789
        %s795 = sand.u32 %s115, 1
        %s796 = scalar_lea.sflag [#allocation4], %s795
        %s797 = sand.u32 %s115, 1
        %s798 = smul.addr %s797, 8
        %s799 = scalar_lea.vmem [#allocation3], %s798
        // Predicated region
        $region37: #{multi_head_attention.1} parent=35 // pred_check
          %p800 = pneg %p125
        $region38: #{multi_head_attention.1} parent=35 // pred_check_branch
          %802 = sbr.rel (%p800) target = $region40
        $region39: #{multi_head_attention.1} parent=35 // pred_region
          %s804 = ssub.s32 128, 128
          %805 = vsyncadd %s796, %s804
          %s806 = smul.addr %s18, 128
          %s807 = scalar_lea.hbm %s4, %s806
          %s809 = sshll.u32 %s799, 4
          %s810 = int_to_ptr.vmem [resolvable:$true] %s809
          %812 = dma.vmem_to_hbm [thread:$0]  %s810, 128, %s807, %s796
        $region40: #{multi_head_attention.1} parent=35 // pred_fallthru
          _
      $region36: #{multi_head_attention.1} parent=5 // pred_fallthru
        _
      %p813 = scmp.le.s32.totalorder 2, %s13
      // Predicated region
      $region41: #{multi_head_attention.1} parent=5 // pred_check
        %p814 = pneg %p813
      $region42: #{multi_head_attention.1} parent=5 // pred_check_branch
        %816 = sbr.rel (%p814) target = $region44
      $region43: #{multi_head_attention.1} parent=5 // pred_region
        %s817 = ssub.s32 %s13, 2
        // Predicated region
        $region45: #{multi_head_attention.1} parent=43 // pred_check
          %p818 = pneg %p131
        $region46: #{multi_head_attention.1} parent=43 // pred_check_branch
          %820 = sbr.rel (%p818) target = $region48
        $region47: #{multi_head_attention.1} parent=43 // pred_region
          %s821 = sand.u32 %s116, 1
          %s822 = scalar_lea.sflag [#allocation4], %s821
          %s823 = sand.u32 %s116, 1
          %s824 = smul.addr %s823, 8
          %s825 = scalar_lea.vmem [#allocation3], %s824
          %826 = dma.done %s822, 128
        $region48: #{multi_head_attention.1} parent=43 // pred_fallthru
          _
      $region44: #{multi_head_attention.1} parent=5 // pred_fallthru
        _
    $region6: #{multi_head_attention.1} parent=1 // loop_footer
      %s17 = sadd.s32 1, %s13
    $region7: #{multi_head_attention.1} parent=1 // loop_footer_branch
      %12 = sbr.rel target = $region3
    $region8: #{multi_head_attention.1} parent=1 // loop_exit
      _
    %827 = vsyncpa [#allocation4], 1
    %s828 = scalar_lea.sflag [#allocation4], 1
    %829 = vsyncpa %s828, 1

</llo_original>
